<compile_context>
chip_gen: v7x
topology: tpu7x:2x2x1
jax: 0.10.0
libtpu: 0.0.40
codegen_flags: <defaults>
</compile_context>

<pallas_src>
import functools

import jax
import jax.numpy as jnp
import numpy as np
from jax.experimental import pallas as pl
from jax.experimental.pallas import tpu as pltpu

_VMEM_LIMIT = 64 * 1024 * 1024


# ----------------------------------------------------------------------------
# Host precompute (mirrors LeniaStepFFT.compute_kernel with kn = 0)
# ----------------------------------------------------------------------------
def _lenia_kernel_spatial(H, W, b):
    jj, ii = np.meshgrid(np.arange(W), np.arange(H))      # jj: col (x), ii: row (y)
    X = (jj - W // 2) / float(W / 2)
    Y = (ii - H // 2) / float(H / 2)
    D = np.sqrt(X ** 2 + Y ** 2)
    b = np.asarray(b, np.float64)
    k = b.shape[0]
    kr = k * D
    bsel = b[np.minimum(np.floor(kr).astype(np.int64), k - 1)]
    r = np.minimum(kr % 1.0, 1.0)
    kernel = (D < 1).astype(np.float64) * (4.0 * r * (1.0 - r)) ** 4 * bsel
    return kernel / kernel.sum()


def build_lenia_constants(H, W, b, *, mode="auto", circulant_max_hw=2048):
    """Precompute everything the fused kernels need (float64 on host)."""
    assert H % 2 == 0 and W % 2 == 0, "roll folding assumes even H, W (roll_n uses size//2)"
    kernel_norm = _lenia_kernel_spatial(H, W, b)
    # Fold the runtime rolls into the kernel:
    #   roll(conv(k, x), -(H//2, W//2)) == conv(roll(k, -(H//2, W//2)), x)
    kshift = np.roll(kernel_norm, shift=(-(H // 2), -(W // 2)), axis=(0, 1))

    if mode == "auto":
        mode = "circulant" if H * W <= circulant_max_hw else "dft"

    f32 = lambda a: jnp.asarray(np.ascontiguousarray(a), jnp.float32)
    consts = {"mode": mode, "H": H, "W": W}

    if mode == "circulant":
        # One real circulant matrix: pot_flat = x_flat @ M,
        #   M[i*W+j, p*W+q] = kshift[(p-i)%H, (q-j)%W]
        HW = H * W
        M = np.empty((HW, HW), np.float64)
        for i in range(H):
            for j in range(W):
                M[i * W + j] = np.roll(kshift, shift=(i, j), axis=(0, 1)).reshape(-1)
        consts["M"] = f32(M)
        return consts

    # DFT-matmul path constants (stacked real/imag).
    def dft_pair(N):
        n = np.arange(N)
        ang = 2.0 * np.pi * np.outer(n, n) / N
        return np.exp(-1j * ang), np.exp(1j * ang) / N

    FH, IH = dft_pair(H)
    FW, IW = dft_pair(W)
    K = np.fft.fft2(kshift)
    consts.update({
        "FW2": f32(np.concatenate([FW.real, FW.imag], axis=1)),    # (W, 2W)
        "FHr": f32(FH.real), "FHi": f32(FH.imag),                  # (H, H)
        "IHr": f32(IH.real), "IHi": f32(IH.imag),                  # (H, H)
        "IW2": f32(np.concatenate([IW.real, -IW.imag], axis=0)),   # (2W, W)
        "Kr": f32(K.real), "Ki": f32(K.imag),                      # (H, W)
    })
    return consts


# ----------------------------------------------------------------------------
# Pallas kernels
# ----------------------------------------------------------------------------
def _circulant_kernel(x_ref, cm_ref, o_ref, *, m, inv_2s2, inv_T, dot_dtype):
    """Small-world path: one real matmul.  x_ref: (band, HW), cm_ref: (HW, HW)."""
    X = x_ref[...]
    pot = jnp.dot(X.astype(dot_dtype), cm_ref[...].astype(dot_dtype),
                  preferred_element_type=jnp.float32)
    field = jnp.exp(-((pot - m) ** 2) * inv_2s2) * 2.0 - 1.0          # gn == 1
    o_ref[...] = jnp.clip(X + inv_T * field, 0.0, 1.0)                # hard clamp


def _dft_kernel(x_ref, fw2_ref, fhr_ref, fhi_ref, ihr_ref, ihi_ref,
                iw2_ref, kr_ref, ki_ref, o_ref, *,
                W, m, inv_2s2, inv_T, dot_dtype):
    """Large-world path, one plane per grid step.  x_ref: (1, H, W)."""
    X = x_ref[0]                                                       # (H, W) f32
    dt = dot_dtype
    dot = lambda a, bmat: jnp.dot(a.astype(dt), bmat.astype(dt),
                                  preferred_element_type=jnp.float32)

    # forward DFT along W (real input):  [Cr | Ci] = X @ [FWr | FWi]
    C = dot(X, fw2_ref[...])                                           # (H, 2W)
    # forward DFT along H on the stacked real/imag columns (2 dots)
    A = dot(fhr_ref[...], C)                                           # [FHr@Cr | FHr@Ci]
    Bt = dot(fhi_ref[...], C)                                          # [FHi@Cr | FHi@Ci]
    Wr = A[:, :W] - Bt[:, W:]
    Wi = A[:, W:] + Bt[:, :W]
    # spectral multiply with the pre-rolled kernel spectrum (VPU, f32)
    Kr, Ki = kr_ref[...], ki_ref[...]
    P = jnp.concatenate([Kr * Wr - Ki * Wi, Kr * Wi + Ki * Wr], axis=1)  # (H, 2W)
    # inverse DFT along H (2 dots on the stacked spectrum)
    A2 = dot(ihr_ref[...], P)
    B2 = dot(ihi_ref[...], P)
    BB = jnp.concatenate([A2[:, :W] - B2[:, W:], A2[:, W:] + B2[:, :W]], axis=1)
    # inverse DFT along W: pot = Br @ IWr - Bi @ IWi  (kept in f32 for accuracy)
    pot = jnp.dot(BB, iw2_ref[...], preferred_element_type=jnp.float32)

    field = jnp.exp(-((pot - m) ** 2) * inv_2s2) * 2.0 - 1.0
    o_ref[0] = jnp.clip(X + inv_T * field, 0.0, 1.0)


# ----------------------------------------------------------------------------
# Wrappers
# ----------------------------------------------------------------------------
def _const_spec(shape):
    nd = len(shape)
    # Constant operand: index_map never changes -> single buffer (halves VMEM).
    return pl.BlockSpec(shape, lambda n: (0,) * nd, pipeline_mode=pl.Buffered(1))


def _plane_band(BC, max_band=64):
    cands = [d for d in range(1, BC + 1)
             if BC % d == 0 and d % 8 == 0 and d <= max_band]
    return max(cands) if cands else BC


def _lenia_step_circulant(x, consts, m, s, T, dot_dtype):
    B, C, H, W = x.shape
    BC, HW = B * C, H * W
    band = _plane_band(BC)
    x2 = x.reshape(BC, HW).astype(jnp.float32)

    kernel = functools.partial(
        _circulant_kernel, m=float(m), inv_2s2=float(1.0 / (2.0 * s * s)),
        inv_T=float(1.0 / T), dot_dtype=dot_dtype)

    out2 = pl.pallas_call(
        kernel,
        grid=(BC // band,),
        in_specs=[pl.BlockSpec((band, HW), lambda n: (n, 0)),
                  _const_spec((HW, HW))],
        out_specs=pl.BlockSpec((band, HW), lambda n: (n, 0)),
        out_shape=jax.ShapeDtypeStruct((BC, HW), jnp.float32),
        compiler_params=pltpu.CompilerParams(
            dimension_semantics=("parallel",),
            vmem_limit_bytes=_VMEM_LIMIT),
    )(x2, consts["M"])
    return out2.reshape(B, C, H, W)


def _lenia_step_dft(x, consts, m, s, T, dot_dtype):
    B, C, H, W = x.shape
    BC = B * C
    x3 = x.reshape(BC, H, W).astype(jnp.float32)
    plane_spec = pl.BlockSpec((1, H, W), lambda n: (n, 0, 0))

    kernel = functools.partial(
        _dft_kernel, W=W, m=float(m), inv_2s2=float(1.0 / (2.0 * s * s)),
        inv_T=float(1.0 / T), dot_dtype=dot_dtype)

    out3 = pl.pallas_call(
        kernel,
        grid=(BC,),
        in_specs=[plane_spec,
                  _const_spec((W, 2 * W)),
                  _const_spec((H, H)), _const_spec((H, H)),
                  _const_spec((H, H)), _const_spec((H, H)),
                  _const_spec((2 * W, W)),
                  _const_spec((H, W)), _const_spec((H, W))],
        out_specs=plane_spec,
        out_shape=jax.ShapeDtypeStruct((BC, H, W), jnp.float32),
        compiler_params=pltpu.CompilerParams(
            dimension_semantics=("parallel",),
            vmem_limit_bytes=_VMEM_LIMIT),
    )(x3, consts["FW2"], consts["FHr"], consts["FHi"],
      consts["IHr"], consts["IHi"], consts["IW2"],
      consts["Kr"], consts["Ki"])
    return out3.reshape(B, C, H, W)


def lenia_step(x, consts, m, s, T, dot_dtype=jnp.float32):
    """x: (B, C, SY, SX) float32 in [0, 1]; returns the next state."""
    if consts["mode"] == "circulant":
        return _lenia_step_circulant(x, consts, m, s, T, dot_dtype)
    return _lenia_step_dft(x, consts, m, s, T, dot_dtype)


# ----------------------------------------------------------------------------
# Pure-JAX reference (mirrors the torch forward literally: full FFT + rolls)
# ----------------------------------------------------------------------------
def lenia_step_ref(x, kernel_fft, m, s, T):
    H, W = x.shape[-2:]
    wfft = jnp.fft.fft2(x.astype(jnp.complex64))
    pot = jnp.real(jnp.fft.ifft2(kernel_fft[None, None] * wfft))
    pot = jnp.roll(pot, shift=(-(H // 2), -(W // 2)), axis=(2, 3))
    field = jnp.exp(-((pot - m) ** 2) / (2.0 * s * s)) * 2.0 - 1.0
    return jnp.clip(x + (1.0 / T) * field, 0.0, 1.0)


if __name__ == "__main__":
    # Deterministic "module parameters" (m, s chosen so the growth zone is
    # actually exercised by uniform-random inputs; they are nn.Parameters in
    # the torch module, so any value is a valid configuration).
    SX = SY = 16              # world size (module default 256; demo stays small)
    H, W = SY, SX             # input layout is (B, C, SY, SX)
    B, C = 2, 4
    T, m, s = 10.0, 0.5, 0.15
    b = [1.0]
    # R (+2) only feeds SphericPad, never touched by the FFT forward path.

    key = jax.random.PRNGKey(0)
    x = jax.random.uniform(key, (B, C, H, W), dtype=jnp.float32)

    kernel_norm = _lenia_kernel_spatial(H, W, b)
    kfft = jnp.asarray(np.fft.fft2(kernel_norm), jnp.complex64)
    ref = jax.block_until_ready(lenia_step_ref(x, kfft, m, s, T))

    # 1) default path at 16x16: single real circulant matmul (f32)
    consts_c = build_lenia_constants(H, W, b)
    assert consts_c["mode"] == "circulant"
    step_c = jax.jit(lambda xx: lenia_step(xx, consts_c, m, s, T))
    out_c = jax.block_until_ready(step_c(x))
    assert out_c.shape == x.shape and out_c.dtype == jnp.float32
    np.testing.assert_allclose(np.asarray(out_c), np.asarray(ref), atol=5e-4, rtol=1e-3)

    # 2) large-world DFT-matmul path, forced at the demo size (f32)
    consts_d = build_lenia_constants(H, W, b, mode="dft")
    step_d = jax.jit(lambda xx: lenia_step(xx, consts_d, m, s, T))
    out_d = jax.block_until_ready(step_d(x))
    np.testing.assert_allclose(np.asarray(out_d), np.asarray(ref), atol=5e-4, rtol=1e-3)

    # 3) DFT path with bf16 MXU operands (looser tolerance: the growth function
    #    amplifies potential error by ~1/s, so bf16 cannot meet 5e-4).
    step_b = jax.jit(lambda xx: lenia_step(xx, consts_d, m, s, T,
                                           dot_dtype=jnp.bfloat16))
    out_b = jax.block_until_ready(step_b(x))
    np.testing.assert_allclose(np.asarray(out_b), np.asarray(ref), atol=2e-2, rtol=2e-2)

    print("KERNEL_OK")
</pallas_src>

<mosaic_0001>
module attributes {stable_mosaic.version = 11 : i64} {
  func.func @_circulant_kernel(%arg0: i32, %arg1: memref<8x256xf32, #tpu.memory_space<vmem>>, %arg2: memref<256x256xf32, #tpu.memory_space<vmem>>, %arg3: memref<8x256xf32, #tpu.memory_space<vmem>>) attributes {dimension_semantics = [#tpu.dimension_semantics<parallel>], iteration_bounds = array<i64: 1>, scalar_prefetch = 0 : i64, scratch_operands = 0 : i64, tpu.core_type = #tpu.core_type<tc>, window_params = [{transform_indices = @transform_0, window_bounds = array<i64: 8, 256>}, {pipeline_mode = #tpu.pipeline_mode<synchronous>, transform_indices = @transform_1, window_bounds = array<i64: 256, 256>}, {transform_indices = @transform_2, window_bounds = array<i64: 8, 256>}]} {
    %c0 = arith.constant 0 : index
    %c0_0 = arith.constant 0 : index
    %0 = vector.load %arg1[%c0, %c0_0] : memref<8x256xf32, #tpu.memory_space<vmem>>, vector<8x256xf32>
    %c0_1 = arith.constant 0 : index
    %c0_2 = arith.constant 0 : index
    %1 = vector.load %arg2[%c0_1, %c0_2] : memref<256x256xf32, #tpu.memory_space<vmem>>, vector<256x256xf32>
    %cst = arith.constant dense<0.000000e+00> : vector<8x256xf32>
    %2 = tpu.matmul %0, %1, %cst {dimension_numbers = #tpu.dot_dimension_numbers<[1], [0], [0], [1], [0, 0, 1, 1], [], []>} : vector<8x256xf32>, vector<256x256xf32>, vector<8x256xf32> -> vector<8x256xf32>
    %cst_3 = arith.constant 5.000000e-01 : f32
    %3 = vector.broadcast %cst_3 : f32 to vector<8x256xf32>
    %4 = arith.subf %2, %3 : vector<8x256xf32>
    %5 = arith.mulf %4, %4 : vector<8x256xf32>
    %cst_4 = arith.constant 0.000000e+00 : f32
    %6 = vector.broadcast %cst_4 : f32 to vector<8x256xf32>
    %7 = arith.subf %6, %5 : vector<8x256xf32>
    %cst_5 = arith.constant 22.2222214 : f32
    %8 = vector.broadcast %cst_5 : f32 to vector<8x256xf32>
    %9 = arith.mulf %7, %8 : vector<8x256xf32>
    %10 = math.exp %9 : vector<8x256xf32>
    %cst_6 = arith.constant 2.000000e+00 : f32
    %11 = vector.broadcast %cst_6 : f32 to vector<8x256xf32>
    %12 = arith.mulf %10, %11 : vector<8x256xf32>
    %cst_7 = arith.constant 1.000000e+00 : f32
    %13 = vector.broadcast %cst_7 : f32 to vector<8x256xf32>
    %14 = arith.subf %12, %13 : vector<8x256xf32>
    %cst_8 = arith.constant 1.000000e-01 : f32
    %15 = vector.broadcast %cst_8 : f32 to vector<8x256xf32>
    %16 = arith.mulf %15, %14 : vector<8x256xf32>
    %17 = arith.addf %0, %16 : vector<8x256xf32>
    %cst_9 = arith.constant 0.000000e+00 : f32
    %cst_10 = arith.constant 1.000000e+00 : f32
    %18 = vector.broadcast %cst_9 : f32 to vector<8x256xf32>
    %19 = arith.maximumf %18, %17 : vector<8x256xf32>
    %20 = vector.broadcast %cst_10 : f32 to vector<8x256xf32>
    %21 = arith.minimumf %20, %19 : vector<8x256xf32>
    %c0_11 = arith.constant 0 : index
    %c0_12 = arith.constant 0 : index
    %22 = vector.load %arg3[%c0_11, %c0_12] : memref<8x256xf32, #tpu.memory_space<vmem>>, vector<8x256xf32>
    tpu.vector_store %arg3[%c0_11, %c0_12], %21 {strides = array<i32>} : memref<8x256xf32, #tpu.memory_space<vmem>>, vector<8x256xf32>,
    return
  }
  func.func @transform_0(%arg0: i32) -> (i32, i32) {
    %c0_i32 = arith.constant 0 : i32
    %c0_i32_0 = arith.constant 0 : i32
    return %arg0, %c0_i32 : i32, i32
  }
  func.func @transform_1(%arg0: i32) -> (i32, i32) {
    %c0_i32 = arith.constant 0 : i32
    %c0_i32_0 = arith.constant 0 : i32
    %c0_i32_1 = arith.constant 0 : i32
    return %c0_i32, %c0_i32_0 : i32, i32
  }
  func.func @transform_2(%arg0: i32) -> (i32, i32) {
    %c0_i32 = arith.constant 0 : i32
    %c0_i32_0 = arith.constant 0 : i32
    return %arg0, %c0_i32 : i32, i32
  }
}

</mosaic_0001>

<llo_original>
// kernel: _lambda_.1
$region0: #{_lambda_.1}
  #allocation0 [shape = 'u32[]', space=smem, size = 0x4, offset = 0x4, fixed_abs, tag = 'smem constant byte address 0x4 - core index']
  #allocation1 [shape = 'u32[144,128]{1,0:T(1,128)}', space=vmem, size = 0x12000, scoped, tag = 'internal scratch']
  %s0 = inlined_call_operand.hbm [shape: f32[8,256], index: 0, kind: input, shape index: {}]
  %s1 = inlined_call_operand.hbm [shape: f32[256,256], index: 1, kind: input, shape index: {}]
  %s2 = inlined_call_operand.hbm [shape: f32[8,256], index: 2, kind: output, shape index: {}]
  %s3 = sld [smem:[#allocation0]]
  $region26: #{_lambda_.1} parent=0
    _
  %s5 = ssub.s32 1, %s3
  %s6 = scalar_select 0, %s5, %s3
  $region1: #{_lambda_.1} parent=0
    #allocation2 [shape = 'u8[8192]{0}', space=vmem, size = 0x2000, scoped, tag = 'input window, operand 0, single buffered']
    #allocation3 [shape = 's32[1]{0}', space=sflag, size = 0x4, scoped, tag = 'scoped memory for _lambda_.1']
    #allocation4 [shape = 's32[1]{0}', space=sflag, size = 0x4, scoped, tag = 'scoped memory for _lambda_.1']
    #allocation5 [shape = 'u8[262144]{0}', space=vmem, size = 0x40000, scoped, tag = 'input window, operand 1, single buffered']
    #allocation6 [shape = 's32[1]{0}', space=sflag, size = 0x4, scoped, tag = 'scoped memory for _lambda_.1']
    #allocation7 [shape = 'u8[8192]{0}', space=vmem, size = 0x2000, scoped, tag = 'output window, operand 0, single buffered']
    %7 = vsyncpa [#allocation3], 0
    %8 = vsyncpa [#allocation6], 0
    %9 = vsyncpa [#allocation4], 0
    // Predicated region
    $region2: #{_lambda_.1} parent=1 // pred_check
      _
    $region3: #{_lambda_.1} parent=1 // pred_check_branch
      %11 = sbr.rel (0) target = $region5
    $region4: #{_lambda_.1} parent=1 // pred_region
      %s13 = ssub.s32 256, 256
      %14 = vsyncadd [#allocation3], %s13
      %s16 = sshll.u32 [#allocation2], 4
      %s17 = int_to_ptr.vmem [resolvable:$true] %s16
      %19 = dma.hbm_to_vmem [thread:$0]  %s0, 256, %s17, [#allocation3]
    $region5: #{_lambda_.1} parent=1 // pred_fallthru
      _
    // Predicated region
    $region6: #{_lambda_.1} parent=1 // pred_check
      _
    $region7: #{_lambda_.1} parent=1 // pred_check_branch
      %21 = sbr.rel (0) target = $region9
    $region8: #{_lambda_.1} parent=1 // pred_region
      %s23 = ssub.s32 8192, 8192
      %24 = vsyncadd [#allocation6], %s23
      %s25 = sshll.u32 [#allocation5], 4
      %s26 = int_to_ptr.vmem [resolvable:$true] %s25
      %31 = dma.hbm_to_vmem [thread:$0]  %s1, 8192, %s26, [#allocation6], 256, 256, 16
    $region9: #{_lambda_.1} parent=1 // pred_fallthru
      _
    // Predicated region
    $region10: #{_lambda_.1} parent=1 // pred_check
      _
    $region11: #{_lambda_.1} parent=1 // pred_check_branch
      %33 = sbr.rel (0) target = $region13
    $region12: #{_lambda_.1} parent=1 // pred_region
      %34 = dma.done [#allocation3], 256
    $region13: #{_lambda_.1} parent=1 // pred_fallthru
      _
    // Predicated region
    $region14: #{_lambda_.1} parent=1 // pred_check
      _
    $region15: #{_lambda_.1} parent=1 // pred_check_branch
      %36 = sbr.rel (0) target = $region17
    $region16: #{_lambda_.1} parent=1 // pred_region
      %37 = dma.done [#allocation6], 8192
    $region17: #{_lambda_.1} parent=1 // pred_fallthru
      _
    %v38 = vld [vmem:[#allocation2] sm:$0xff]
    %v39 = vld [vmem:[#allocation2 + $0x8] sm:$0xff]
    %v40 = vld [vmem:[#allocation5] sm:$0xff]
    %v41 = vld [vmem:[#allocation5 + $0x8] sm:$0xff]
    %v42 = vld [vmem:[#allocation5 + $0x10] sm:$0xff]
    %v43 = vld [vmem:[#allocation5 + $0x18] sm:$0xff]
    %v44 = vld [vmem:[#allocation5 + $0x20] sm:$0xff]
    %v45 = vld [vmem:[#allocation5 + $0x28] sm:$0xff]
    %v46 = vld [vmem:[#allocation5 + $0x30] sm:$0xff]
    %v47 = vld [vmem:[#allocation5 + $0x38] sm:$0xff]
    %v48 = vld [vmem:[#allocation5 + $0x40] sm:$0xff]
    %v49 = vld [vmem:[#allocation5 + $0x48] sm:$0xff]
    %v50 = vld [vmem:[#allocation5 + $0x50] sm:$0xff]
    %v51 = vld [vmem:[#allocation5 + $0x58] sm:$0xff]
    %v52 = vld [vmem:[#allocation5 + $0x60] sm:$0xff]
    %v53 = vld [vmem:[#allocation5 + $0x68] sm:$0xff]
    %v54 = vld [vmem:[#allocation5 + $0x70] sm:$0xff]
    %v55 = vld [vmem:[#allocation5 + $0x78] sm:$0xff]
    %v56 = vld [vmem:[#allocation5 + $0x80] sm:$0xff]
    %v57 = vld [vmem:[#allocation5 + $0x88] sm:$0xff]
    %v58 = vld [vmem:[#allocation5 + $0x90] sm:$0xff]
    %v59 = vld [vmem:[#allocation5 + $0x98] sm:$0xff]
    %v60 = vld [vmem:[#allocation5 + $0xa0] sm:$0xff]
    %v61 = vld [vmem:[#allocation5 + $0xa8] sm:$0xff]
    %v62 = vld [vmem:[#allocation5 + $0xb0] sm:$0xff]
    %v63 = vld [vmem:[#allocation5 + $0xb8] sm:$0xff]
    %v64 = vld [vmem:[#allocation5 + $0xc0] sm:$0xff]
    %v65 = vld [vmem:[#allocation5 + $0xc8] sm:$0xff]
    %v66 = vld [vmem:[#allocation5 + $0xd0] sm:$0xff]
    %v67 = vld [vmem:[#allocation5 + $0xd8] sm:$0xff]
    %v68 = vld [vmem:[#allocation5 + $0xe0] sm:$0xff]
    %v69 = vld [vmem:[#allocation5 + $0xe8] sm:$0xff]
    %v70 = vld [vmem:[#allocation5 + $0xf0] sm:$0xff]
    %v71 = vld [vmem:[#allocation5 + $0xf8] sm:$0xff]
    %v72 = vld [vmem:[#allocation5 + $0x100] sm:$0xff]
    %v73 = vld [vmem:[#allocation5 + $0x108] sm:$0xff]
    %v74 = vld [vmem:[#allocation5 + $0x110] sm:$0xff]
    %v75 = vld [vmem:[#allocation5 + $0x118] sm:$0xff]
    %v76 = vld [vmem:[#allocation5 + $0x120] sm:$0xff]
    %v77 = vld [vmem:[#allocation5 + $0x128] sm:$0xff]
    %v78 = vld [vmem:[#allocation5 + $0x130] sm:$0xff]
    %v79 = vld [vmem:[#allocation5 + $0x138] sm:$0xff]
    %v80 = vld [vmem:[#allocation5 + $0x140] sm:$0xff]
    %v81 = vld [vmem:[#allocation5 + $0x148] sm:$0xff]
    %v82 = vld [vmem:[#allocation5 + $0x150] sm:$0xff]
    %v83 = vld [vmem:[#allocation5 + $0x158] sm:$0xff]
    %v84 = vld [vmem:[#allocation5 + $0x160] sm:$0xff]
    %v85 = vld [vmem:[#allocation5 + $0x168] sm:$0xff]
    %v86 = vld [vmem:[#allocation5 + $0x170] sm:$0xff]
    %v87 = vld [vmem:[#allocation5 + $0x178] sm:$0xff]
    %v88 = vld [vmem:[#allocation5 + $0x180] sm:$0xff]
    %v89 = vld [vmem:[#allocation5 + $0x188] sm:$0xff]
    %v90 = vld [vmem:[#allocation5 + $0x190] sm:$0xff]
    %v91 = vld [vmem:[#allocation5 + $0x198] sm:$0xff]
    %v92 = vld [vmem:[#allocation5 + $0x1a0] sm:$0xff]
    %v93 = vld [vmem:[#allocation5 + $0x1a8] sm:$0xff]
    %v94 = vld [vmem:[#allocation5 + $0x1b0] sm:$0xff]
    %v95 = vld [vmem:[#allocation5 + $0x1b8] sm:$0xff]
    %v96 = vld [vmem:[#allocation5 + $0x1c0] sm:$0xff]
    %v97 = vld [vmem:[#allocation5 + $0x1c8] sm:$0xff]
    %v98 = vld [vmem:[#allocation5 + $0x1d0] sm:$0xff]
    %v99 = vld [vmem:[#allocation5 + $0x1d8] sm:$0xff]
    %v100 = vld [vmem:[#allocation5 + $0x1e0] sm:$0xff]
    %v101 = vld [vmem:[#allocation5 + $0x1e8] sm:$0xff]
    %v102 = vld [vmem:[#allocation5 + $0x1f0] sm:$0xff]
    %v103 = vld [vmem:[#allocation5 + $0x1f8] sm:$0xff]
    %104 = vmatprep.subr.mxu0 %v41
    %105 = vmatpush1.msra.mxu0 %v40
    %106 = vmatprep.subr.mxu0 %v43
    %107 = vmatpush1.msra.mxu0 %v42
    %108 = vmatprep.subr.mxu0 %v45
    %109 = vmatpush1.msra.mxu0 %v44
    %110 = vmatprep.subr.mxu0 %v47
    %111 = vmatpush1.msra.mxu0 %v46
    %112 = vmatprep.subr.mxu0 %v49
    %113 = vmatpush1.msra.mxu0 %v48
    %114 = vmatprep.subr.mxu0 %v51
    %115 = vmatpush1.msra.mxu0 %v50
    %116 = vmatprep.subr.mxu0 %v53
    %117 = vmatpush1.msra.mxu0 %v52
    %118 = vmatprep.subr.mxu0 %v55
    %119 = vmatpush1.msra.mxu0 %v54
    %120 = vmatprep.subr.mxu0 %v57
    %121 = vmatpush1.msra.mxu0 %v56
    %122 = vmatprep.subr.mxu0 %v59
    %123 = vmatpush1.msra.mxu0 %v58
    %124 = vmatprep.subr.mxu0 %v61
    %125 = vmatpush1.msra.mxu0 %v60
    %126 = vmatprep.subr.mxu0 %v63
    %127 = vmatpush1.msra.mxu0 %v62
    %128 = vmatprep.subr.mxu0 %v65
    %129 = vmatpush1.msra.mxu0 %v64
    %130 = vmatprep.subr.mxu0 %v67
    %131 = vmatpush1.msra.mxu0 %v66
    %132 = vmatprep.subr.mxu0 %v69
    %133 = vmatpush1.msra.mxu0 %v68
    %134 = vmatprep.subr.mxu0 %v71
    %135 = vmatpush1.msra.mxu0 %v70
    %136 = vmatprep.subr.mxu0 %v73
    %137 = vmatpush1.msra.mxu0 %v72
    %138 = vmatprep.subr.mxu0 %v75
    %139 = vmatpush1.msra.mxu0 %v74
    %140 = vmatprep.subr.mxu0 %v77
    %141 = vmatpush1.msra.mxu0 %v76
    %142 = vmatprep.subr.mxu0 %v79
    %143 = vmatpush1.msra.mxu0 %v78
    %144 = vmatprep.subr.mxu0 %v81
    %145 = vmatpush1.msra.mxu0 %v80
    %146 = vmatprep.subr.mxu0 %v83
    %147 = vmatpush1.msra.mxu0 %v82
    %148 = vmatprep.subr.mxu0 %v85
    %149 = vmatpush1.msra.mxu0 %v84
    %150 = vmatprep.subr.mxu0 %v87
    %151 = vmatpush1.msra.mxu0 %v86
    %152 = vmatprep.subr.mxu0 %v89
    %153 = vmatpush1.msra.mxu0 %v88
    %154 = vmatprep.subr.mxu0 %v91
    %155 = vmatpush1.msra.mxu0 %v90
    %156 = vmatprep.subr.mxu0 %v93
    %157 = vmatpush1.msra.mxu0 %v92
    %158 = vmatprep.subr.mxu0 %v95
    %159 = vmatpush1.msra.mxu0 %v94
    %160 = vmatprep.subr.mxu0 %v97
    %161 = vmatpush1.msra.mxu0 %v96
    %162 = vmatprep.subr.mxu0 %v99
    %163 = vmatpush1.msra.mxu0 %v98
    %164 = vmatprep.subr.mxu0 %v101
    %165 = vmatpush1.msra.mxu0 %v100
    %166 = vmatprep.subr.mxu0 %v103
    %167 = vmatpush1.msra.mxu0 %v102
    %168 = vmatprep.mubr.f32.mxu0 %v39
    %169 = vmatmul.mubr.f32.gmra.mrb[0].mxu0 %v38
    %v170 = vpop.f32.mrb[0].mxu0
    %v171 = vadd.f32 0.0, %v170
    %v172 = vpop.f32.mrb[0].mxu0
    %v173 = vadd.f32 0.0, %v172
    %174 = vdwg.mxu0
    %v175 = vsub.f32 %v171, 0.5
    %v176 = vsub.f32 %v173, 0.5
    %v177 = vmul.f32 %v175, %v175
    %v178 = vmul.f32 %v176, %v176
    %v179 = vsub.f32 0.0, %v177
    %v180 = vsub.f32 0.0, %v178
    %v181 = vmul.f32 %v179, 22.222221
    %v182 = vmul.f32 %v180, 22.222221
    %v183 = vmul.f32 %v181, 1.442695
    %v184 = vpow.pop %v183
    %v185 = vmul.f32 %v182, 1.442695
    %v186 = vpow.pop %v185
    %v187 = vmul.f32 %v184, 2.0
    %v188 = vmul.f32 %v186, 2.0
    %v189 = vsub.f32 %v187, 1.0
    %v190 = vsub.f32 %v188, 1.0
    %v191 = vmul.f32 %v189, 0.1
    %v192 = vmul.f32 %v190, 0.1
    %v193 = vadd.f32 %v38, %v191
    %v194 = vadd.f32 %v39, %v192
    %v195 = vmax.f32 %v193, 0.0
    %v196 = vmax.f32 %v194, 0.0
    %v197 = vmin.f32 %v195, 1.0
    %v198 = vmin.f32 %v196, 1.0
    %199 = vst [vmem:[#allocation7] sm:$0xff] %v197
    %200 = vst [vmem:[#allocation7 + $0x8] sm:$0xff] %v198
    // Predicated region
    $region18: #{_lambda_.1} parent=1 // pred_check
      _
    $region19: #{_lambda_.1} parent=1 // pred_check_branch
      %202 = sbr.rel (0) target = $region21
    $region20: #{_lambda_.1} parent=1 // pred_region
      %s204 = ssub.s32 256, 256
      %205 = vsyncadd [#allocation4], %s204
      %s207 = sshll.u32 [#allocation7], 4
      %s208 = int_to_ptr.vmem [resolvable:$true] %s207
      %210 = dma.vmem_to_hbm [thread:$0]  %s208, 256, %s2, [#allocation4]
    $region21: #{_lambda_.1} parent=1 // pred_fallthru
      _
    // Predicated region
    $region22: #{_lambda_.1} parent=1 // pred_check
      _
    $region23: #{_lambda_.1} parent=1 // pred_check_branch
      %212 = sbr.rel (0) target = $region25
    $region24: #{_lambda_.1} parent=1 // pred_region
      %213 = dma.done [#allocation4], 256
    $region25: #{_lambda_.1} parent=1 // pred_fallthru
      _
    %214 = vsyncpa [#allocation3], 1
    %215 = vsyncpa [#allocation6], 1
    %216 = vsyncpa [#allocation4], 1

</llo_original>
